<compile_context>
chip_gen: v7x
topology: tpu7x:2x2x1
jax: 0.10.0
libtpu: 0.0.40
codegen_flags: <defaults>
</compile_context>

<pallas_src>
import functools

import numpy as np
import jax
import jax.numpy as jnp
from jax.experimental import pallas as pl
from jax.experimental.pallas import tpu as pltpu


# ----------------------------- Pallas kernel ------------------------------ #

def region_aware_conv_kernel(x_ref, w_ref, b_ref, o_ref, *, P, m, Bt, C, Lslot):
    # Pack Bt samples into the lane axis: xp[p, b*m + j] = x[b, p, j].
    xp = jnp.concatenate([x_ref[b] for b in range(Bt)], axis=1)          # (P, Bt*m)

    # One MXU matmul computes every pre-pool conv row of every branch/channel.
    pre = jnp.dot(w_ref[...], xp, preferred_element_type=jnp.float32)   # (C*Lslot, Bt*m)

    # AdaptiveMaxPool2d == segment max; segments were padded to Lslot rows
    # (Lslot is a multiple of 8, so the reshape is vreg-tile aligned).
    pooled = jnp.max(pre.reshape(C, Lslot, Bt * m), axis=1)             # (C, Bt*m)

    # Bias (per output channel) + tanh.  Bias commutes with the max because it
    # is constant per channel.
    act = jnp.tanh(pooled + b_ref[...])                                  # (C, Bt*m)

    # Emit PyTorch's permute(0, 2, 1) layout directly: (Bt, m, C).
    o_ref[...] = jnp.transpose(act).reshape(Bt, m, C)


def region_aware_conv(x, w_taps, b_col, *, P, m, k, hidP):
    """x: (B, P, m) f32.  Returns (B, m, 4*k*hidP + k) f32 (== PyTorch output)."""
    B = x.shape[0]
    C = 4 * k * hidP + k
    R = w_taps.shape[0]
    Lslot = R // C

    Bt = max(1, 128 // m)                 # lane-packing factor: Bt*m ~= 128
    nb = -(-B // Bt)
    B_pad = nb * Bt
    if B_pad != B:                        # pad batch to a multiple of Bt
        x = jnp.concatenate([x, jnp.zeros((B_pad - B, P, m), x.dtype)], axis=0)

    kernel = functools.partial(region_aware_conv_kernel,
                               P=P, m=m, Bt=Bt, C=C, Lslot=Lslot)
    out = pl.pallas_call(
        kernel,
        out_shape=jax.ShapeDtypeStruct((B_pad, m, C), jnp.float32),
        grid_spec=pltpu.PrefetchScalarGridSpec(
            num_scalar_prefetch=0,
            grid=(nb,),
            in_specs=[pl.BlockSpec((Bt, P, m), lambda b: (b, 0, 0)),
                      pl.BlockSpec((R, P), lambda b: (0, 0)),
                      pl.BlockSpec((C, 1), lambda b: (0, 0))],
            out_specs=pl.BlockSpec((Bt, m, C), lambda b: (b, 0, 0)),
        ),
        compiler_params=pltpu.CompilerParams(
            dimension_semantics=("parallel",)),
    )(x, w_taps, b_col)
    return out[:B]                        # no wrapper transpose needed


# --------------------------- parameter building --------------------------- #

def _fold_bn(w, b, gamma, beta, mean, var, eps=1e-5):
    """Fold eval-mode BatchNorm2d into the conv's per-channel affine."""
    scale = gamma / jnp.sqrt(var + eps)
    return w * scale[:, None], (b - mean) * scale + beta


def make_params(key, *, P, k):
    """Deterministically build the 5 ConvBranch parameter sets (BN folded)."""
    kernel_sizes = [3, 5, 3, 5, P]
    params = []
    for i, K in enumerate(kernel_sizes):
        ks = jax.random.split(jax.random.fold_in(key, i), 6)
        w = jax.random.normal(ks[0], (k, K), jnp.float32) * 0.3      # (k,1,K,1) squeezed
        b = jax.random.normal(ks[1], (k,), jnp.float32) * 0.1
        gamma = 1.0 + 0.1 * jax.random.normal(ks[2], (k,), jnp.float32)
        beta = 0.1 * jax.random.normal(ks[3], (k,), jnp.float32)
        mean = 0.1 * jax.random.normal(ks[4], (k,), jnp.float32)
        var = jnp.abs(1.0 + 0.1 * jax.random.normal(ks[5], (k,), jnp.float32))
        w_eff, b_eff = _fold_bn(w, b, gamma, beta, mean, var)
        params += [w_eff, b_eff]
    return tuple(params)  # (wl1,bl1,wl2,bl2,wp1,bp1,wp2,bp2,wg,bg)


def build_tap_matrix(params, *, P, k, hidP, dil):
    """Flatten the 5 folded ConvBranch params into one tap matrix + bias column.

    w_taps: (C*Lslot, P) f32 — row (r*Lslot + l) holds the conv taps producing
            the l-th pre-pool time position of output channel r; pool segments
            are padded by duplicating a row (max is idempotent), so a plain max
            over the Lslot axis reproduces AdaptiveMaxPool2d exactly.
    b_col : (C, 1) f32 per-output-channel bias (BN folded).
    """
    p_np = [np.asarray(p) for p in params]
    (wl1, bl1, wl2, bl2, wp1, bp1, wp2, bp2, wg, bg) = p_np
    branches = [(wl1, bl1, 3, 1, True),
                (wl2, bl2, 5, 1, True),
                (wp1, bp1, 3, dil, True),
                (wp2, bp2, 5, dil, True),
                (wg, bg, P, 1, False)]
    segments, biases = [], []
    for w, b, K, d, pooled in branches:
        H = P - d * (K - 1)
        for c in range(k):                      # channel-major, pool-index inner
            taps = np.zeros((H, P), np.float32)
            for h in range(H):
                for j in range(K):
                    taps[h, h + j * d] += w[c, j]
            if pooled:
                for p_ in range(hidP):          # AdaptiveMaxPool2d boundaries
                    s = (p_ * H) // hidP
                    e = ((p_ + 1) * H + hidP - 1) // hidP
                    segments.append(taps[s:e])
                    biases.append(b[c])
            else:                               # global branch: H == 1, no pool
                segments.append(taps)
                biases.append(b[c])
    C = len(segments)
    max_seg = max(seg.shape[0] for seg in segments)
    Lslot = max(8, -(-max_seg // 8) * 8)        # multiple of 8 -> aligned reshape
    w_taps = np.zeros((C, Lslot, P), np.float32)
    for r, seg in enumerate(segments):
        w_taps[r, :seg.shape[0]] = seg
        w_taps[r, seg.shape[0]:] = seg[0]       # pad by duplication
    return (jnp.asarray(w_taps.reshape(C * Lslot, P)),
            jnp.asarray(np.asarray(biases, np.float32).reshape(C, 1)))


# ------------------------------ JAX reference ------------------------------ #

def reference(x, params, *, P, m, k, hidP, dil):
    (wl1, bl1, wl2, bl2, wp1, bp1, wp2, bp2, wg, bg) = params
    B = x.shape[0]

    def branch(w, b, K, d, pool):
        H = P - d * (K - 1)
        taps = jnp.stack([x[:, j * d: j * d + H, :] for j in range(K)], axis=1)  # (B,K,H,m)
        conv = jnp.einsum('ck,bkhm->bchm', w, taps) + b[None, :, None, None]
        if pool:
            rows = []
            for p in range(hidP):
                s = (p * H) // hidP
                e = ((p + 1) * H + hidP - 1) // hidP
                rows.append(jnp.max(conv[:, :, s:e, :], axis=2))                 # (B,k,m)
            return jnp.stack(rows, axis=2).reshape(B, k * hidP, m)
        return conv.reshape(B, k, m)

    parts = [branch(wl1, bl1, 3, 1, True),
             branch(wl2, bl2, 5, 1, True),
             branch(wp1, bp1, 3, dil, True),
             branch(wp2, bp2, 5, dil, True),
             branch(wg, bg, P, 1, False)]
    out = jnp.concatenate(parts, axis=1)            # (B, C, m)
    return jnp.tanh(jnp.transpose(out, (0, 2, 1)))  # (B, m, C)


# ---------------------------------- main ----------------------------------- #

if __name__ == "__main__":
    B, P, m, k, hidP, dil = 16, 16, 16, 4, 2, 2     # 2 lane-packed grid steps

    key = jax.random.PRNGKey(0)
    kx, kw = jax.random.split(key)
    x = jax.random.normal(kx, (B, P, m), jnp.float32)
    params = make_params(kw, P=P, k=k)
    w_taps, b_col = build_tap_matrix(params, P=P, k=k, hidP=hidP, dil=dil)

    out = region_aware_conv(x, w_taps, b_col, P=P, m=m, k=k, hidP=hidP)
    out = jax.block_until_ready(out)

    ref = jax.block_until_ready(reference(x, params, P=P, m=m, k=k, hidP=hidP, dil=dil))

    assert out.shape == (B, m, 4 * k * hidP + k), out.shape
    np.testing.assert_allclose(np.asarray(out), np.asarray(ref), rtol=1e-3, atol=1e-4)

    print("KERNEL_OK")
</pallas_src>

<mosaic_0001>
module attributes {stable_mosaic.version = 11 : i64} {
  func.func @region_aware_conv_kernel(%arg0: i32, %arg1: memref<8x16x16xf32, #tpu.memory_space<vmem>>, %arg2: memref<288x16xf32, #tpu.memory_space<vmem>>, %arg3: memref<36x1xf32, #tpu.memory_space<vmem>>, %arg4: memref<8x16x36xf32, #tpu.memory_space<vmem>>) attributes {dimension_semantics = [#tpu.dimension_semantics<parallel>], iteration_bounds = array<i64: 2>, scalar_prefetch = 0 : i64, scratch_operands = 0 : i64, tpu.core_type = #tpu.core_type<tc>, window_params = [{transform_indices = @transform_0, window_bounds = array<i64: 8, 16, 16>}, {pipeline_mode = #tpu.pipeline_mode<synchronous>, transform_indices = @transform_1, window_bounds = array<i64: 288, 16>}, {pipeline_mode = #tpu.pipeline_mode<synchronous>, transform_indices = @transform_2, window_bounds = array<i64: 36, 1>}, {transform_indices = @transform_3, window_bounds = array<i64: 8, 16, 36>}]} {
    %c0 = arith.constant 0 : index
    %c0_0 = arith.constant 0 : index
    %c0_1 = arith.constant 0 : index
    %0 = vector.load %arg1[%c0, %c0_0, %c0_1] : memref<8x16x16xf32, #tpu.memory_space<vmem>>, vector<1x16x16xf32>
    %1 = vector.shape_cast %0 : vector<1x16x16xf32> to vector<16x16xf32>
    %c1 = arith.constant 1 : index
    %c0_2 = arith.constant 0 : index
    %c0_3 = arith.constant 0 : index
    %2 = vector.load %arg1[%c1, %c0_2, %c0_3] : memref<8x16x16xf32, #tpu.memory_space<vmem>>, vector<1x16x16xf32>
    %3 = vector.shape_cast %2 : vector<1x16x16xf32> to vector<16x16xf32>
    %c2 = arith.constant 2 : index
    %c0_4 = arith.constant 0 : index
    %c0_5 = arith.constant 0 : index
    %4 = vector.load %arg1[%c2, %c0_4, %c0_5] : memref<8x16x16xf32, #tpu.memory_space<vmem>>, vector<1x16x16xf32>
    %5 = vector.shape_cast %4 : vector<1x16x16xf32> to vector<16x16xf32>
    %c3 = arith.constant 3 : index
    %c0_6 = arith.constant 0 : index
    %c0_7 = arith.constant 0 : index
    %6 = vector.load %arg1[%c3, %c0_6, %c0_7] : memref<8x16x16xf32, #tpu.memory_space<vmem>>, vector<1x16x16xf32>
    %7 = vector.shape_cast %6 : vector<1x16x16xf32> to vector<16x16xf32>
    %c4 = arith.constant 4 : index
    %c0_8 = arith.constant 0 : index
    %c0_9 = arith.constant 0 : index
    %8 = vector.load %arg1[%c4, %c0_8, %c0_9] : memref<8x16x16xf32, #tpu.memory_space<vmem>>, vector<1x16x16xf32>
    %9 = vector.shape_cast %8 : vector<1x16x16xf32> to vector<16x16xf32>
    %c5 = arith.constant 5 : index
    %c0_10 = arith.constant 0 : index
    %c0_11 = arith.constant 0 : index
    %10 = vector.load %arg1[%c5, %c0_10, %c0_11] : memref<8x16x16xf32, #tpu.memory_space<vmem>>, vector<1x16x16xf32>
    %11 = vector.shape_cast %10 : vector<1x16x16xf32> to vector<16x16xf32>
    %c6 = arith.constant 6 : index
    %c0_12 = arith.constant 0 : index
    %c0_13 = arith.constant 0 : index
    %12 = vector.load %arg1[%c6, %c0_12, %c0_13] : memref<8x16x16xf32, #tpu.memory_space<vmem>>, vector<1x16x16xf32>
    %13 = vector.shape_cast %12 : vector<1x16x16xf32> to vector<16x16xf32>
    %c7 = arith.constant 7 : index
    %c0_14 = arith.constant 0 : index
    %c0_15 = arith.constant 0 : index
    %14 = vector.load %arg1[%c7, %c0_14, %c0_15] : memref<8x16x16xf32, #tpu.memory_space<vmem>>, vector<1x16x16xf32>
    %15 = vector.shape_cast %14 : vector<1x16x16xf32> to vector<16x16xf32>
    %16 = tpu.concatenate %1, %3, %5, %7, %9, %11, %13, %15 in 1 : vector<16x16xf32>, vector<16x16xf32>, vector<16x16xf32>, vector<16x16xf32>, vector<16x16xf32>, vector<16x16xf32>, vector<16x16xf32>, vector<16x16xf32> -> vector<16x128xf32>
    %c0_16 = arith.constant 0 : index
    %c0_17 = arith.constant 0 : index
    %17 = vector.load %arg2[%c0_16, %c0_17] : memref<288x16xf32, #tpu.memory_space<vmem>>, vector<288x16xf32>
    %cst = arith.constant dense<0.000000e+00> : vector<288x128xf32>
    %18 = tpu.matmul %17, %16, %cst {dimension_numbers = #tpu.dot_dimension_numbers<[1], [0], [0], [1], [0, 0, 1, 1], [], []>} : vector<288x16xf32>, vector<16x128xf32>, vector<288x128xf32> -> vector<288x128xf32>
    %19 = vector.shape_cast %18 : vector<288x128xf32> to vector<36x8x128xf32>
    %cst_18 = arith.constant dense<0xFF800000> : vector<36x128xf32>
    %20 = vector.multi_reduction <maximumf>, %19, %cst_18 [1] : vector<36x8x128xf32> to vector<36x128xf32>
    %c0_19 = arith.constant 0 : index
    %c0_20 = arith.constant 0 : index
    %21 = vector.load %arg3[%c0_19, %c0_20] : memref<36x1xf32, #tpu.memory_space<vmem>>, vector<36x1xf32>
    %22 = vector.broadcast %21 : vector<36x1xf32> to vector<36x128xf32>
    %23 = arith.addf %20, %22 : vector<36x128xf32>
    %24 = math.tanh %23 : vector<36x128xf32>
    %25 = tpu.transpose %24, [1, 0] : vector<36x128xf32> -> vector<128x36xf32>
    %26 = vector.shape_cast %25 : vector<128x36xf32> to vector<8x16x36xf32>
    %c0_21 = arith.constant 0 : index
    %c0_22 = arith.constant 0 : index
    %c0_23 = arith.constant 0 : index
    %27 = vector.load %arg4[%c0_21, %c0_22, %c0_23] : memref<8x16x36xf32, #tpu.memory_space<vmem>>, vector<8x16x36xf32>
    tpu.vector_store %arg4[%c0_21, %c0_22, %c0_23], %26 {strides = array<i32>} : memref<8x16x36xf32, #tpu.memory_space<vmem>>, vector<8x16x36xf32>,
    return
  }
  func.func @transform_0(%arg0: i32) -> (i32, i32, i32) {
    %c0_i32 = arith.constant 0 : i32
    %c0_i32_0 = arith.constant 0 : i32
    %c0_i32_1 = arith.constant 0 : i32
    return %arg0, %c0_i32, %c0_i32_0 : i32, i32, i32
  }
  func.func @transform_1(%arg0: i32) -> (i32, i32) {
    %c0_i32 = arith.constant 0 : i32
    %c0_i32_0 = arith.constant 0 : i32
    %c0_i32_1 = arith.constant 0 : i32
    return %c0_i32, %c0_i32_0 : i32, i32
  }
  func.func @transform_2(%arg0: i32) -> (i32, i32) {
    %c0_i32 = arith.constant 0 : i32
    %c0_i32_0 = arith.constant 0 : i32
    %c0_i32_1 = arith.constant 0 : i32
    return %c0_i32, %c0_i32_0 : i32, i32
  }
  func.func @transform_3(%arg0: i32) -> (i32, i32, i32) {
    %c0_i32 = arith.constant 0 : i32
    %c0_i32_0 = arith.constant 0 : i32
    %c0_i32_1 = arith.constant 0 : i32
    return %arg0, %c0_i32, %c0_i32_0 : i32, i32, i32
  }
}

</mosaic_0001>

<llo_original>
// kernel: tpu_custom_call.1
$region0: #{tpu_custom_call.1}
  #allocation0 [shape = 'u32[]', space=smem, size = 0x4, offset = 0x4, fixed_abs, tag = 'smem constant byte address 0x4 - core index']
  #allocation1 [shape = 'u32[144,128]{1,0:T(1,128)}', space=vmem, size = 0x12000, scoped, tag = 'internal scratch']
  %s0 = inlined_call_operand.vmem [shape: f32[16,16,16], index: 0, kind: input, shape index: {}]
  %s1 = inlined_call_operand.vmem [shape: f32[288,16], index: 1, kind: input, shape index: {}]
  %s2 = inlined_call_operand.vmem [shape: f32[36,1], index: 2, kind: input, shape index: {}]
  %s3 = inlined_call_operand.hbm [shape: f32[16,16,36], index: 3, kind: output, shape index: {}]
  %s4 = sld [smem:[#allocation0]]
  $region45: #{tpu_custom_call.1} parent=0
    _
  %s6 = ssub.s32 1, %s4
  %s7 = scalar_select 0, %s6, %s4
  $region1: #{tpu_custom_call.1} parent=0
    #allocation2 [shape = 'u8[131072]{0}', space=vmem, size = 0x20000, scoped, tag = 'output window, operand 0']
    #allocation3 [shape = 's32[2]{0}', space=sflag, size = 0x8, scoped, tag = 'scoped memory for tpu_custom_call.1']
    %8 = vsyncpa [#allocation3], 0
    %s9 = scalar_lea.sflag [#allocation3], 1
    %10 = vsyncpa %s9, 0
    loop: start=0, step=1, limit=4
    $region2: #{tpu_custom_call.1} parent=1 // loop_pre_header
      _
    $region3: #{tpu_custom_call.1} parent=1 // loop_header
      %s12 = sphi 0, %s16
      %p13 = scmp.ge.s32.totalorder %s12, 4
      %s22 = sphi 0, %s24
      %s25 = sphi 0, %s22
      %s26 = sphi 0, %s25
      %s42 = sphi 0, %s26
      %s46 = sphi 0, %s46
      %s48 = sphi 0, %s46
      %s49 = sphi 0, %s48
      %s63 = sphi 0, %s49
      %s67 = sphi 0, %s67
      %s69 = sphi 0, %s67
      %s70 = sphi 0, %s69
      %s84 = sphi 0, %s70
      %s90 = sphi 0, %s92
      %s93 = sphi 0, %s90
      %s94 = sphi 0, %s93
      %s110 = sphi 0, %s94
    $region4: #{tpu_custom_call.1} parent=1 // loop_header_branch
      %15 = sbr.rel (%p13) target = $region8
    $region5: #{tpu_custom_call.1} parent=1 // loop_body
      %s17 = ssub.s32 %s12, 1
      %s18 = ssub.s32 %s12, 2
      %s19 = sadd.s32 %s12, 1
      %s20 = ssub.s32 %s12, %s19
      %p21 = scmp.eq.s32.totalorder %s20, 0
      %s23 = sadd.s32 %s22, 1
      %s24 = scalar_select %p21, %s22, %s23
      %p27 = pneg %p21
      %p28 = scmp.eq.s32.totalorder %s12, 1
      %p29 = por %p27, %p28
      %p30 = scmp.ne.s32.totalorder %s22, %s25
      %p31 = scmp.eq.s32.totalorder %s12, 0
      %p32 = por %p30, %p31
      %p33 = scmp.ne.s32.totalorder %s22, %s25
      %p34 = scmp.eq.s32.totalorder %s17, 1
      %p35 = por %p33, %p34
      %p36 = scmp.ne.s32.totalorder %s25, %s26
      %p37 = scmp.eq.s32.totalorder %s17, 0
      %p38 = por %p36, %p37
      %p39 = scmp.ne.s32.totalorder %s25, %s26
      %p40 = scmp.eq.s32.totalorder %s18, 1
      %p41 = por %p39, %p40
      %p43 = scmp.ne.s32.totalorder %s26, %s42
      %p44 = scmp.eq.s32.totalorder %s18, 0
      %p45 = por %p43, %p44
      %s47 = sadd.s32 %s46, 1
      %p50 = scmp.eq.s32.totalorder %s12, 1
      %p51 = scmp.ne.s32.totalorder %s46, %s48
      %p52 = scmp.eq.s32.totalorder %s12, 0
      %p53 = por %p51, %p52
      %p54 = scmp.ne.s32.totalorder %s46, %s48
      %p55 = scmp.eq.s32.totalorder %s17, 1
      %p56 = por %p54, %p55
      %p57 = scmp.ne.s32.totalorder %s48, %s49
      %p58 = scmp.eq.s32.totalorder %s17, 0
      %p59 = por %p57, %p58
      %p60 = scmp.ne.s32.totalorder %s48, %s49
      %p61 = scmp.eq.s32.totalorder %s18, 1
      %p62 = por %p60, %p61
      %p64 = scmp.ne.s32.totalorder %s49, %s63
      %p65 = scmp.eq.s32.totalorder %s18, 0
      %p66 = por %p64, %p65
      %s68 = sadd.s32 %s67, 1
      %p71 = scmp.eq.s32.totalorder %s12, 1
      %p72 = scmp.ne.s32.totalorder %s67, %s69
      %p73 = scmp.eq.s32.totalorder %s12, 0
      %p74 = por %p72, %p73
      %p75 = scmp.ne.s32.totalorder %s67, %s69
      %p76 = scmp.eq.s32.totalorder %s17, 1
      %p77 = por %p75, %p76
      %p78 = scmp.ne.s32.totalorder %s69, %s70
      %p79 = scmp.eq.s32.totalorder %s17, 0
      %p80 = por %p78, %p79
      %p81 = scmp.ne.s32.totalorder %s69, %s70
      %p82 = scmp.eq.s32.totalorder %s18, 1
      %p83 = por %p81, %p82
      %p85 = scmp.ne.s32.totalorder %s70, %s84
      %p86 = scmp.eq.s32.totalorder %s18, 0
      %p87 = por %p85, %p86
      %s88 = ssub.s32 %s12, %s19
      %p89 = scmp.eq.s32.totalorder %s88, 0
      %s91 = sadd.s32 %s90, 1
      %s92 = scalar_select %p89, %s90, %s91
      %p95 = pneg %p89
      %p96 = scmp.eq.s32.totalorder %s12, 1
      %p97 = por %p95, %p96
      %p98 = scmp.ne.s32.totalorder %s90, %s93
      %p99 = scmp.eq.s32.totalorder %s12, 0
      %p100 = por %p98, %p99
      %p101 = scmp.ne.s32.totalorder %s90, %s93
      %p102 = scmp.eq.s32.totalorder %s17, 1
      %p103 = por %p101, %p102
      %p104 = scmp.ne.s32.totalorder %s93, %s94
      %p105 = scmp.eq.s32.totalorder %s17, 0
      %p106 = por %p104, %p105
      %p107 = scmp.ne.s32.totalorder %s93, %s94
      %p108 = scmp.eq.s32.totalorder %s18, 1
      %p109 = por %p107, %p108
      %p111 = scmp.ne.s32.totalorder %s94, %s110
      %p112 = scmp.eq.s32.totalorder %s18, 0
      %p113 = por %p111, %p112
      %p114 = scmp.le.s32.totalorder 1, %s12
      %p115 = scmp.lt.s32.totalorder %s12, 3
      %p116 = pnand %p114, %p115
      %p117 = pneg %p116
      // Predicated region
      $region9: #{tpu_custom_call.1} parent=5 // pred_check
        _
      $region10: #{tpu_custom_call.1} parent=5 // pred_check_branch
        %119 = sbr.rel (%p116) target = $region12
      $region11: #{tpu_custom_call.1} parent=5 // pred_region
        %s120 = ssub.s32 %s12, 1
        // Predicated region
        $region13: #{tpu_custom_call.1} parent=11 // pred_check
          %p121 = pneg %p59
        $region14: #{tpu_custom_call.1} parent=11 // pred_check_branch
          %123 = sbr.rel (%p121) target = $region16
        $region15: #{tpu_custom_call.1} parent=11 // pred_region
          _
        $region16: #{tpu_custom_call.1} parent=11 // pred_fallthru
          _
        // Predicated region
        $region17: #{tpu_custom_call.1} parent=11 // pred_check
          %p124 = pneg %p80
        $region18: #{tpu_custom_call.1} parent=11 // pred_check_branch
          %126 = sbr.rel (%p124) target = $region20
        $region19: #{tpu_custom_call.1} parent=11 // pred_region
          _
        $region20: #{tpu_custom_call.1} parent=11 // pred_fallthru
          _
      $region12: #{tpu_custom_call.1} parent=5 // pred_fallthru
        _
      %p127 = scmp.lt.s32.totalorder %s12, 2
      // Predicated region
      $region21: #{tpu_custom_call.1} parent=5 // pred_check
        %p128 = pneg %p127
      $region22: #{tpu_custom_call.1} parent=5 // pred_check_branch
        %130 = sbr.rel (%p128) target = $region24
      $region23: #{tpu_custom_call.1} parent=5 // pred_region
        // Predicated region
        $region25: #{tpu_custom_call.1} parent=23 // pred_check
          %p131 = pneg %p32
        $region26: #{tpu_custom_call.1} parent=23 // pred_check_branch
          %133 = sbr.rel (%p131) target = $region28
        $region27: #{tpu_custom_call.1} parent=23 // pred_region
          %s134 = smul.u32 8, %s12
          %p135 = scmp.lt.s32.totalorder %s134, 15
          %s136 = scalar_select %p135, %s134, 15
          %s137 = smul.addr %s136, 2
          %s138 = smul.addr %s137, 8
          %s139 = scalar_lea.vmem %s0, %s138
          %s140 = smul.u32 8, %s12
        $region28: #{tpu_custom_call.1} parent=23 // pred_fallthru
          _
      $region24: #{tpu_custom_call.1} parent=5 // pred_fallthru
        _
      %p141 = scmp.le.s32.totalorder 1, %s12
      %p142 = scmp.lt.s32.totalorder %s12, 3
      %p143 = pnand %p141, %p142
      %p144 = pneg %p143
      // Predicated region
      $region29: #{tpu_custom_call.1} parent=5 // pred_check
        _
      $region30: #{tpu_custom_call.1} parent=5 // pred_check_branch
        %146 = sbr.rel (%p143) target = $region32
      $region31: #{tpu_custom_call.1} parent=5 // pred_region
        %s147 = ssub.s32 %s12, 1
        %s148 = smul.u32 8, %s17
        %p149 = scmp.lt.s32.totalorder %s148, 15
        %s150 = scalar_select %p149, %s148, 15
        %s151 = smul.addr %s150, 2
        %s152 = smul.addr %s151, 8
        %s153 = scalar_lea.vmem %s0, %s152
        %p154 = pneg %p38
        %p155 = pneg %p35
        %p156 = pneg %p59
        %p157 = pneg %p56
        %p158 = pneg %p80
        %p159 = pneg %p77
        %p160 = pneg %p106
        %p161 = pneg %p103
        %s162 = sand.u32 %s93, 1
        %s163 = scalar_lea.sflag [#allocation3], %s162
        %s164 = sand.u32 %s93, 1
        %s165 = smul.addr %s164, 128
        %s166 = scalar_lea.vmem [#allocation2], %s165
        %s167 = smul.u32 8, %s17
        %p168 = scmp.lt.s32.totalorder %s167, 15
        %s169 = scalar_select %p168, %s167, 15
        %s170 = smul.addr %s169, 2
        %s171 = smul.addr %s170, 8
        %s172 = scalar_lea.vmem %s0, %s171
        %s173 = smul.u32 8, %s17
        %s174 = smul.u32 8, %s17
        %v175 = vld [vmem:[%s172] sm:$0xff]
        %v176 = vld [vmem:[%s172 + $0x8] sm:$0xff]
        %s177 = scalar_lea.vmem %s172, 16
        %v178 = vld [vmem:[%s177] sm:$0xff]
        %v179 = vld [vmem:[%s177 + $0x8] sm:$0xff]
        %s180 = scalar_lea.vmem %s172, 32
        %v181 = vld [vmem:[%s180] sm:$0xff]
        %v182 = vld [vmem:[%s180 + $0x8] sm:$0xff]
        %s183 = scalar_lea.vmem %s172, 48
        %v184 = vld [vmem:[%s183] sm:$0xff]
        %v185 = vld [vmem:[%s183 + $0x8] sm:$0xff]
        %s186 = scalar_lea.vmem %s172, 64
        %v187 = vld [vmem:[%s186] sm:$0xff]
        %v188 = vld [vmem:[%s186 + $0x8] sm:$0xff]
        %s189 = scalar_lea.vmem %s172, 80
        %v190 = vld [vmem:[%s189] sm:$0xff]
        %v191 = vld [vmem:[%s189 + $0x8] sm:$0xff]
        %s192 = scalar_lea.vmem %s172, 96
        %v193 = vld [vmem:[%s192] sm:$0xff]
        %v194 = vld [vmem:[%s192 + $0x8] sm:$0xff]
        %s195 = scalar_lea.vmem %s172, 112
        %v196 = vld [vmem:[%s195] sm:$0xff]
        %v197 = vld [vmem:[%s195 + $0x8] sm:$0xff]
        %200 = vrot.lane.b32.xlu0 %v178, 16
        %v201 = vpop.permute.xlu0 %200
        %202 = vrot.lane.b32.xlu0 %v179, 16
        %v203 = vpop.permute.xlu0 %202
        %208 = vrot.lane.b32.xlu0 %v181, 32
        %v209 = vpop.permute.xlu0 %208
        %210 = vrot.lane.b32.xlu0 %v182, 32
        %v211 = vpop.permute.xlu0 %210
        %216 = vrot.lane.b32.xlu0 %v184, 48
        %v217 = vpop.permute.xlu0 %216
        %218 = vrot.lane.b32.xlu0 %v185, 48
        %v219 = vpop.permute.xlu0 %218
        %224 = vrot.lane.b32.xlu0 %v187, 64
        %v225 = vpop.permute.xlu0 %224
        %226 = vrot.lane.b32.xlu0 %v188, 64
        %v227 = vpop.permute.xlu0 %226
        %232 = vrot.lane.b32.xlu0 %v190, 80
        %v233 = vpop.permute.xlu0 %232
        %234 = vrot.lane.b32.xlu0 %v191, 80
        %v235 = vpop.permute.xlu0 %234
        %240 = vrot.lane.b32.xlu0 %v193, 96
        %v241 = vpop.permute.xlu0 %240
        %242 = vrot.lane.b32.xlu0 %v194, 96
        %v243 = vpop.permute.xlu0 %242
        %248 = vrot.lane.b32.xlu0 %v196, 112
        %v249 = vpop.permute.xlu0 %248
        %250 = vrot.lane.b32.xlu0 %v197, 112
        %v251 = vpop.permute.xlu0 %250
        %vm254 = vcmask 130048
        %v255 = vsel %vm254, %v175, %v201
        %v256 = vsel %vm254, %v176, %v203
        %vm257 = vcmask 261120
        %v258 = vsel %vm257, %v255, %v209
        %v259 = vsel %vm257, %v256, %v211
        %vm260 = vcmask 392192
        %v261 = vsel %vm260, %v258, %v217
        %v262 = vsel %vm260, %v259, %v219
        %vm263 = vcmask 523264
        %v264 = vsel %vm263, %v261, %v225
        %v265 = vsel %vm263, %v262, %v227
        %vm266 = vcmask 654336
        %v267 = vsel %vm266, %v264, %v233
        %v268 = vsel %vm266, %v265, %v235
        %vm269 = vcmask 785408
        %v270 = vsel %vm269, %v267, %v241
        %v271 = vsel %vm269, %v268, %v243
        %vm272 = vcmask 916480
        %v273 = vsel %vm272, %v270, %v249
        %v274 = vsel %vm272, %v271, %v251
        %v275 = vld [vmem:[%s1] sm:$0xff]
        %v276 = vld [vmem:[%s1 + $0x8] sm:$0xff]
        %v277 = vld [vmem:[%s1 + $0x10] sm:$0xff]
        %v278 = vld [vmem:[%s1 + $0x18] sm:$0xff]
        %v279 = vld [vmem:[%s1 + $0x20] sm:$0xff]
        %v280 = vld [vmem:[%s1 + $0x28] sm:$0xff]
        %v281 = vld [vmem:[%s1 + $0x30] sm:$0xff]
        %v282 = vld [vmem:[%s1 + $0x38] sm:$0xff]
        %v283 = vld [vmem:[%s1 + $0x40] sm:$0xff]
        %v284 = vld [vmem:[%s1 + $0x48] sm:$0xff]
        %v285 = vld [vmem:[%s1 + $0x50] sm:$0xff]
        %v286 = vld [vmem:[%s1 + $0x58] sm:$0xff]
        %v287 = vld [vmem:[%s1 + $0x60] sm:$0xff]
        %v288 = vld [vmem:[%s1 + $0x68] sm:$0xff]
        %v289 = vld [vmem:[%s1 + $0x70] sm:$0xff]
        %v290 = vld [vmem:[%s1 + $0x78] sm:$0xff]
        %v291 = vld [vmem:[%s1 + $0x80] sm:$0xff]
        %v292 = vld [vmem:[%s1 + $0x88] sm:$0xff]
        %v293 = vld [vmem:[%s1 + $0x90] sm:$0xff]
        %v294 = vld [vmem:[%s1 + $0x98] sm:$0xff]
        %v295 = vld [vmem:[%s1 + $0xa0] sm:$0xff]
        %v296 = vld [vmem:[%s1 + $0xa8] sm:$0xff]
        %v297 = vld [vmem:[%s1 + $0xb0] sm:$0xff]
        %v298 = vld [vmem:[%s1 + $0xb8] sm:$0xff]
        %v299 = vld [vmem:[%s1 + $0xc0] sm:$0xff]
        %v300 = vld [vmem:[%s1 + $0xc8] sm:$0xff]
        %v301 = vld [vmem:[%s1 + $0xd0] sm:$0xff]
        %v302 = vld [vmem:[%s1 + $0xd8] sm:$0xff]
        %v303 = vld [vmem:[%s1 + $0xe0] sm:$0xff]
        %v304 = vld [vmem:[%s1 + $0xe8] sm:$0xff]
        %v305 = vld [vmem:[%s1 + $0xf0] sm:$0xff]
        %v306 = vld [vmem:[%s1 + $0xf8] sm:$0xff]
        %v307 = vld [vmem:[%s1 + $0x100] sm:$0xff]
        %v308 = vld [vmem:[%s1 + $0x108] sm:$0xff]
        %v309 = vld [vmem:[%s1 + $0x110] sm:$0xff]
        %v310 = vld [vmem:[%s1 + $0x118] sm:$0xff]
        %v312 = vsel %vm254, %v275, 0
        %v315 = vsel %vm254, %v276, 0
        %v318 = vsel %vm254, %v277, 0
        %v321 = vsel %vm254, %v278, 0
        %v324 = vsel %vm254, %v279, 0
        %v327 = vsel %vm254, %v280, 0
        %v330 = vsel %vm254, %v281, 0
        %v333 = vsel %vm254, %v282, 0
        %v336 = vsel %vm254, %v283, 0
        %v339 = vsel %vm254, %v284, 0
        %v342 = vsel %vm254, %v285, 0
        %v345 = vsel %vm254, %v286, 0
        %v348 = vsel %vm254, %v287, 0
        %v351 = vsel %vm254, %v288, 0
        %v354 = vsel %vm254, %v289, 0
        %v357 = vsel %vm254, %v290, 0
        %v360 = vsel %vm254, %v291, 0
        %v363 = vsel %vm254, %v292, 0
        %v366 = vsel %vm254, %v293, 0
        %v369 = vsel %vm254, %v294, 0
        %v372 = vsel %vm254, %v295, 0
        %v375 = vsel %vm254, %v296, 0
        %v378 = vsel %vm254, %v297, 0
        %v381 = vsel %vm254, %v298, 0
        %v384 = vsel %vm254, %v299, 0
        %v387 = vsel %vm254, %v300, 0
        %v390 = vsel %vm254, %v301, 0
        %v393 = vsel %vm254, %v302, 0
        %v396 = vsel %vm254, %v303, 0
        %v399 = vsel %vm254, %v304, 0
        %v402 = vsel %vm254, %v305, 0
        %v405 = vsel %vm254, %v306, 0
        %v408 = vsel %vm254, %v307, 0
        %v411 = vsel %vm254, %v308, 0
        %v414 = vsel %vm254, %v309, 0
        %v417 = vsel %vm254, %v310, 0
        %419 = vmatprep.subr.mxu0 0.0
        %420 = vmatpush1.msra.mxu0 %v273
        %421 = vmatprep.subr.mxu0 0.0
        %422 = vmatpush1.msra.mxu0 %v274
        %423 = vmatprep.subr.mxu0 0.0
        %424 = vmatpush1.msra.mxu0 0.0
        %425 = vmatprep.subr.mxu0 0.0
        %426 = vmatpush1.msra.mxu0 0.0
        %427 = vmatprep.subr.mxu0 0.0
        %428 = vmatpush1.msra.mxu0 0.0
        %429 = vmatprep.subr.mxu0 0.0
        %430 = vmatpush1.msra.mxu0 0.0
        %431 = vmatprep.subr.mxu0 0.0
        %432 = vmatpush1.msra.mxu0 0.0
        %433 = vmatprep.subr.mxu0 0.0
        %434 = vmatpush1.msra.mxu0 0.0
        %435 = vmatprep.subr.mxu0 0.0
        %436 = vmatpush1.msra.mxu0 0.0
        %437 = vmatprep.subr.mxu0 0.0
        %438 = vmatpush1.msra.mxu0 0.0
        %439 = vmatprep.subr.mxu0 0.0
        %440 = vmatpush1.msra.mxu0 0.0
        %441 = vmatprep.subr.mxu0 0.0
        %442 = vmatpush1.msra.mxu0 0.0
        %443 = vmatprep.subr.mxu0 0.0
        %444 = vmatpush1.msra.mxu0 0.0
        %445 = vmatprep.subr.mxu0 0.0
        %446 = vmatpush1.msra.mxu0 0.0
        %447 = vmatprep.subr.mxu0 0.0
        %448 = vmatpush1.msra.mxu0 0.0
        %449 = vmatprep.subr.mxu0 0.0
        %450 = vmatpush1.msra.mxu0 0.0
        %451 = vmatprep.subr.mxu0 0.0
        %452 = vmatpush1.msra.mxu0 0.0
        %453 = vmatprep.subr.mxu0 0.0
        %454 = vmatpush1.msra.mxu0 0.0
        %455 = vmatprep.subr.mxu0 0.0
        %456 = vmatpush1.msra.mxu0 0.0
        %457 = vmatprep.subr.mxu0 0.0
        %458 = vmatpush1.msra.mxu0 0.0
        %459 = vmatprep.subr.mxu0 0.0
        %460 = vmatpush1.msra.mxu0 0.0
        %461 = vmatprep.subr.mxu0 0.0
        %462 = vmatpush1.msra.mxu0 0.0
        %463 = vmatprep.subr.mxu0 0.0
        %464 = vmatpush1.msra.mxu0 0.0
        %465 = vmatprep.subr.mxu0 0.0
        %466 = vmatpush1.msra.mxu0 0.0
        %467 = vmatprep.subr.mxu0 0.0
        %468 = vmatpush1.msra.mxu0 0.0
        %469 = vmatprep.subr.mxu0 0.0
        %470 = vmatpush1.msra.mxu0 0.0
        %471 = vmatprep.subr.mxu0 0.0
        %472 = vmatpush1.msra.mxu0 0.0
        %473 = vmatprep.subr.mxu0 0.0
        %474 = vmatpush1.msra.mxu0 0.0
        %475 = vmatprep.subr.mxu0 0.0
        %476 = vmatpush1.msra.mxu0 0.0
        %477 = vmatprep.subr.mxu0 0.0
        %478 = vmatpush1.msra.mxu0 0.0
        %479 = vmatprep.subr.mxu0 0.0
        %480 = vmatpush1.msra.mxu0 0.0
        %481 = vmatprep.subr.mxu0 0.0
        %482 = vmatpush1.msra.mxu0 0.0
        %483 = vmatprep.mubr.f32.mxu0 0.0
        %484 = vmatmul.mubr.f32.gmra.mrb[0].mxu0 %v312
        %v485 = vpop.f32.mrb[0].mxu0
        %v486 = vadd.f32 0.0, %v485
        %v487 = vpop.f32.mrb[0].mxu0
        %488 = vmatprep.mubr.f32.mxu0 0.0
        %489 = vmatmul.mubr.f32.gmra.mrb[0].mxu0 %v315
        %v490 = vpop.f32.mrb[0].mxu0
        %v491 = vadd.f32 0.0, %v490
        %v492 = vpop.f32.mrb[0].mxu0
        %493 = vmatprep.mubr.f32.mxu0 0.0
        %494 = vmatmul.mubr.f32.gmra.mrb[0].mxu0 %v318
        %v495 = vpop.f32.mrb[0].mxu0
        %v496 = vadd.f32 0.0, %v495
        %v497 = vpop.f32.mrb[0].mxu0
        %498 = vmatprep.mubr.f32.mxu0 0.0
        %499 = vmatmul.mubr.f32.gmra.mrb[0].mxu0 %v321
        %v500 = vpop.f32.mrb[0].mxu0
        %v501 = vadd.f32 0.0, %v500
        %v502 = vpop.f32.mrb[0].mxu0
        %503 = vmatprep.mubr.f32.mxu0 0.0
        %504 = vmatmul.mubr.f32.gmra.mrb[0].mxu0 %v324
        %v505 = vpop.f32.mrb[0].mxu0
        %v506 = vadd.f32 0.0, %v505
        %v507 = vpop.f32.mrb[0].mxu0
        %508 = vmatprep.mubr.f32.mxu0 0.0
        %509 = vmatmul.mubr.f32.gmra.mrb[0].mxu0 %v327
        %v510 = vpop.f32.mrb[0].mxu0
        %v511 = vadd.f32 0.0, %v510
        %v512 = vpop.f32.mrb[0].mxu0
        %513 = vmatprep.mubr.f32.mxu0 0.0
        %514 = vmatmul.mubr.f32.gmra.mrb[0].mxu0 %v330
        %v515 = vpop.f32.mrb[0].mxu0
        %v516 = vadd.f32 0.0, %v515
        %v517 = vpop.f32.mrb[0].mxu0
        %518 = vmatprep.mubr.f32.mxu0 0.0
        %519 = vmatmul.mubr.f32.gmra.mrb[0].mxu0 %v333
        %v520 = vpop.f32.mrb[0].mxu0
        %v521 = vadd.f32 0.0, %v520
        %v522 = vpop.f32.mrb[0].mxu0
        %523 = vmatprep.mubr.f32.mxu0 0.0
        %524 = vmatmul.mubr.f32.gmra.mrb[0].mxu0 %v336
        %v525 = vpop.f32.mrb[0].mxu0
        %v526 = vadd.f32 0.0, %v525
        %v527 = vpop.f32.mrb[0].mxu0
        %528 = vmatprep.mubr.f32.mxu0 0.0
        %529 = vmatmul.mubr.f32.gmra.mrb[0].mxu0 %v339
        %v530 = vpop.f32.mrb[0].mxu0
        %v531 = vadd.f32 0.0, %v530
        %v532 = vpop.f32.mrb[0].mxu0
        %533 = vmatprep.mubr.f32.mxu0 0.0
        %534 = vmatmul.mubr.f32.gmra.mrb[0].mxu0 %v342
        %v535 = vpop.f32.mrb[0].mxu0
        %v536 = vadd.f32 0.0, %v535
        %v537 = vpop.f32.mrb[0].mxu0
        %538 = vmatprep.mubr.f32.mxu0 0.0
        %539 = vmatmul.mubr.f32.gmra.mrb[0].mxu0 %v345
        %v540 = vpop.f32.mrb[0].mxu0
        %v541 = vadd.f32 0.0, %v540
        %v542 = vpop.f32.mrb[0].mxu0
        %543 = vmatprep.mubr.f32.mxu0 0.0
        %544 = vmatmul.mubr.f32.gmra.mrb[0].mxu0 %v348
        %v545 = vpop.f32.mrb[0].mxu0
        %v546 = vadd.f32 0.0, %v545
        %v547 = vpop.f32.mrb[0].mxu0
        %548 = vmatprep.mubr.f32.mxu0 0.0
        %549 = vmatmul.mubr.f32.gmra.mrb[0].mxu0 %v351
        %v550 = vpop.f32.mrb[0].mxu0
        %v551 = vadd.f32 0.0, %v550
        %v552 = vpop.f32.mrb[0].mxu0
        %553 = vmatprep.mubr.f32.mxu0 0.0
        %554 = vmatmul.mubr.f32.gmra.mrb[0].mxu0 %v354
        %v555 = vpop.f32.mrb[0].mxu0
        %v556 = vadd.f32 0.0, %v555
        %v557 = vpop.f32.mrb[0].mxu0
        %558 = vmatprep.mubr.f32.mxu0 0.0
        %559 = vmatmul.mubr.f32.gmra.mrb[0].mxu0 %v357
        %v560 = vpop.f32.mrb[0].mxu0
        %v561 = vadd.f32 0.0, %v560
        %v562 = vpop.f32.mrb[0].mxu0
        %563 = vmatprep.mubr.f32.mxu0 0.0
        %564 = vmatmul.mubr.f32.gmra.mrb[0].mxu0 %v360
        %v565 = vpop.f32.mrb[0].mxu0
        %v566 = vadd.f32 0.0, %v565
        %v567 = vpop.f32.mrb[0].mxu0
        %568 = vmatprep.mubr.f32.mxu0 0.0
        %569 = vmatmul.mubr.f32.gmra.mrb[0].mxu0 %v363
        %v570 = vpop.f32.mrb[0].mxu0
        %v571 = vadd.f32 0.0, %v570
        %v572 = vpop.f32.mrb[0].mxu0
        %573 = vmatprep.mubr.f32.mxu0 0.0
        %574 = vmatmul.mubr.f32.gmra.mrb[0].mxu0 %v366
        %v575 = vpop.f32.mrb[0].mxu0
        %v576 = vadd.f32 0.0, %v575
        %v577 = vpop.f32.mrb[0].mxu0
        %578 = vmatprep.mubr.f32.mxu0 0.0
        %579 = vmatmul.mubr.f32.gmra.mrb[0].mxu0 %v369
        %v580 = vpop.f32.mrb[0].mxu0
        %v581 = vadd.f32 0.0, %v580
        %v582 = vpop.f32.mrb[0].mxu0
        %583 = vmatprep.mubr.f32.mxu0 0.0
        %584 = vmatmul.mubr.f32.gmra.mrb[0].mxu0 %v372
        %v585 = vpop.f32.mrb[0].mxu0
        %v586 = vadd.f32 0.0, %v585
        %v587 = vpop.f32.mrb[0].mxu0
        %588 = vmatprep.mubr.f32.mxu0 0.0
        %589 = vmatmul.mubr.f32.gmra.mrb[0].mxu0 %v375
        %v590 = vpop.f32.mrb[0].mxu0
        %v591 = vadd.f32 0.0, %v590
        %v592 = vpop.f32.mrb[0].mxu0
        %593 = vmatprep.mubr.f32.mxu0 0.0
        %594 = vmatmul.mubr.f32.gmra.mrb[0].mxu0 %v378
        %v595 = vpop.f32.mrb[0].mxu0
        %v596 = vadd.f32 0.0, %v595
        %v597 = vpop.f32.mrb[0].mxu0
        %598 = vmatprep.mubr.f32.mxu0 0.0
        %599 = vmatmul.mubr.f32.gmra.mrb[0].mxu0 %v381
        %v600 = vpop.f32.mrb[0].mxu0
        %v601 = vadd.f32 0.0, %v600
        %v602 = vpop.f32.mrb[0].mxu0
        %603 = vmatprep.mubr.f32.mxu0 0.0
        %604 = vmatmul.mubr.f32.gmra.mrb[0].mxu0 %v384
        %v605 = vpop.f32.mrb[0].mxu0
        %v606 = vadd.f32 0.0, %v605
        %v607 = vpop.f32.mrb[0].mxu0
        %608 = vmatprep.mubr.f32.mxu0 0.0
        %609 = vmatmul.mubr.f32.gmra.mrb[0].mxu0 %v387
        %v610 = vpop.f32.mrb[0].mxu0
        %v611 = vadd.f32 0.0, %v610
        %v612 = vpop.f32.mrb[0].mxu0
        %613 = vmatprep.mubr.f32.mxu0 0.0
        %614 = vmatmul.mubr.f32.gmra.mrb[0].mxu0 %v390
        %v615 = vpop.f32.mrb[0].mxu0
        %v616 = vadd.f32 0.0, %v615
        %v617 = vpop.f32.mrb[0].mxu0
        %618 = vmatprep.mubr.f32.mxu0 0.0
        %619 = vmatmul.mubr.f32.gmra.mrb[0].mxu0 %v393
        %v620 = vpop.f32.mrb[0].mxu0
        %v621 = vadd.f32 0.0, %v620
        %v622 = vpop.f32.mrb[0].mxu0
        %623 = vmatprep.mubr.f32.mxu0 0.0
        %624 = vmatmul.mubr.f32.gmra.mrb[0].mxu0 %v396
        %v625 = vpop.f32.mrb[0].mxu0
        %v626 = vadd.f32 0.0, %v625
        %v627 = vpop.f32.mrb[0].mxu0
        %628 = vmatprep.mubr.f32.mxu0 0.0
        %629 = vmatmul.mubr.f32.gmra.mrb[0].mxu0 %v399
        %v630 = vpop.f32.mrb[0].mxu0
        %v631 = vadd.f32 0.0, %v630
        %v632 = vpop.f32.mrb[0].mxu0
        %633 = vmatprep.mubr.f32.mxu0 0.0
        %634 = vmatmul.mubr.f32.gmra.mrb[0].mxu0 %v402
        %v635 = vpop.f32.mrb[0].mxu0
        %v636 = vadd.f32 0.0, %v635
        %v637 = vpop.f32.mrb[0].mxu0
        %638 = vmatprep.mubr.f32.mxu0 0.0
        %639 = vmatmul.mubr.f32.gmra.mrb[0].mxu0 %v405
        %v640 = vpop.f32.mrb[0].mxu0
        %v641 = vadd.f32 0.0, %v640
        %v642 = vpop.f32.mrb[0].mxu0
        %643 = vmatprep.mubr.f32.mxu0 0.0
        %644 = vmatmul.mubr.f32.gmra.mrb[0].mxu0 %v408
        %v645 = vpop.f32.mrb[0].mxu0
        %v646 = vadd.f32 0.0, %v645
        %v647 = vpop.f32.mrb[0].mxu0
        %648 = vmatprep.mubr.f32.mxu0 0.0
        %649 = vmatmul.mubr.f32.gmra.mrb[0].mxu0 %v411
        %v650 = vpop.f32.mrb[0].mxu0
        %v651 = vadd.f32 0.0, %v650
        %v652 = vpop.f32.mrb[0].mxu0
        %653 = vmatprep.mubr.f32.mxu0 0.0
        %654 = vmatmul.mubr.f32.gmra.mrb[0].mxu0 %v414
        %v655 = vpop.f32.mrb[0].mxu0
        %v656 = vadd.f32 0.0, %v655
        %v657 = vpop.f32.mrb[0].mxu0
        %658 = vmatprep.mubr.f32.mxu0 0.0
        %659 = vmatmul.mubr.f32.gmra.mrb[0].mxu0 %v417
        %v660 = vpop.f32.mrb[0].mxu0
        %v661 = vadd.f32 0.0, %v660
        %v662 = vpop.f32.mrb[0].mxu0
        %663 = vdwg.mxu0
        %v664 = vrot.slane %v486, 4
        %v665 = vmax.f32 %v486, %v664
        %v666 = vrot.slane %v665, 2
        %v667 = vmax.f32 %v665, %v666
        %v668 = vrot.slane %v667, 1
        %v669 = vmax.f32 %v667, %v668
        %v670 = vrot.slane %v491, 4
        %v671 = vmax.f32 %v491, %v670
        %v672 = vrot.slane %v671, 2
        %v673 = vmax.f32 %v671, %v672
        %v674 = vrot.slane %v673, 1
        %v675 = vmax.f32 %v673, %v674
        %v676 = vrot.slane %v496, 4
        %v677 = vmax.f32 %v496, %v676
        %v678 = vrot.slane %v677, 2
        %v679 = vmax.f32 %v677, %v678
        %v680 = vrot.slane %v679, 1
        %v681 = vmax.f32 %v679, %v680
        %v682 = vrot.slane %v501, 4
        %v683 = vmax.f32 %v501, %v682
        %v684 = vrot.slane %v683, 2
        %v685 = vmax.f32 %v683, %v684
        %v686 = vrot.slane %v685, 1
        %v687 = vmax.f32 %v685, %v686
        %v688 = vrot.slane %v506, 4
        %v689 = vmax.f32 %v506, %v688
        %v690 = vrot.slane %v689, 2
        %v691 = vmax.f32 %v689, %v690
        %v692 = vrot.slane %v691, 1
        %v693 = vmax.f32 %v691, %v692
        %v694 = vrot.slane %v511, 4
        %v695 = vmax.f32 %v511, %v694
        %v696 = vrot.slane %v695, 2
        %v697 = vmax.f32 %v695, %v696
        %v698 = vrot.slane %v697, 1
        %v699 = vmax.f32 %v697, %v698
        %v700 = vrot.slane %v516, 4
        %v701 = vmax.f32 %v516, %v700
        %v702 = vrot.slane %v701, 2
        %v703 = vmax.f32 %v701, %v702
        %v704 = vrot.slane %v703, 1
        %v705 = vmax.f32 %v703, %v704
        %v706 = vrot.slane %v521, 4
        %v707 = vmax.f32 %v521, %v706
        %v708 = vrot.slane %v707, 2
        %v709 = vmax.f32 %v707, %v708
        %v710 = vrot.slane %v709, 1
        %v711 = vmax.f32 %v709, %v710
        %v712 = vrot.slane %v526, 4
        %v713 = vmax.f32 %v526, %v712
        %v714 = vrot.slane %v713, 2
        %v715 = vmax.f32 %v713, %v714
        %v716 = vrot.slane %v715, 1
        %v717 = vmax.f32 %v715, %v716
        %v718 = vrot.slane %v531, 4
        %v719 = vmax.f32 %v531, %v718
        %v720 = vrot.slane %v719, 2
        %v721 = vmax.f32 %v719, %v720
        %v722 = vrot.slane %v721, 1
        %v723 = vmax.f32 %v721, %v722
        %v724 = vrot.slane %v536, 4
        %v725 = vmax.f32 %v536, %v724
        %v726 = vrot.slane %v725, 2
        %v727 = vmax.f32 %v725, %v726
        %v728 = vrot.slane %v727, 1
        %v729 = vmax.f32 %v727, %v728
        %v730 = vrot.slane %v541, 4
        %v731 = vmax.f32 %v541, %v730
        %v732 = vrot.slane %v731, 2
        %v733 = vmax.f32 %v731, %v732
        %v734 = vrot.slane %v733, 1
        %v735 = vmax.f32 %v733, %v734
        %v736 = vrot.slane %v546, 4
        %v737 = vmax.f32 %v546, %v736
        %v738 = vrot.slane %v737, 2
        %v739 = vmax.f32 %v737, %v738
        %v740 = vrot.slane %v739, 1
        %v741 = vmax.f32 %v739, %v740
        %v742 = vrot.slane %v551, 4
        %v743 = vmax.f32 %v551, %v742
        %v744 = vrot.slane %v743, 2
        %v745 = vmax.f32 %v743, %v744
        %v746 = vrot.slane %v745, 1
        %v747 = vmax.f32 %v745, %v746
        %v748 = vrot.slane %v556, 4
        %v749 = vmax.f32 %v556, %v748
        %v750 = vrot.slane %v749, 2
        %v751 = vmax.f32 %v749, %v750
        %v752 = vrot.slane %v751, 1
        %v753 = vmax.f32 %v751, %v752
        %v754 = vrot.slane %v561, 4
        %v755 = vmax.f32 %v561, %v754
        %v756 = vrot.slane %v755, 2
        %v757 = vmax.f32 %v755, %v756
        %v758 = vrot.slane %v757, 1
        %v759 = vmax.f32 %v757, %v758
        %v760 = vrot.slane %v566, 4
        %v761 = vmax.f32 %v566, %v760
        %v762 = vrot.slane %v761, 2
        %v763 = vmax.f32 %v761, %v762
        %v764 = vrot.slane %v763, 1
        %v765 = vmax.f32 %v763, %v764
        %v766 = vrot.slane %v571, 4
        %v767 = vmax.f32 %v571, %v766
        %v768 = vrot.slane %v767, 2
        %v769 = vmax.f32 %v767, %v768
        %v770 = vrot.slane %v769, 1
        %v771 = vmax.f32 %v769, %v770
        %v772 = vrot.slane %v576, 4
        %v773 = vmax.f32 %v576, %v772
        %v774 = vrot.slane %v773, 2
        %v775 = vmax.f32 %v773, %v774
        %v776 = vrot.slane %v775, 1
        %v777 = vmax.f32 %v775, %v776
        %v778 = vrot.slane %v581, 4
        %v779 = vmax.f32 %v581, %v778
        %v780 = vrot.slane %v779, 2
        %v781 = vmax.f32 %v779, %v780
        %v782 = vrot.slane %v781, 1
        %v783 = vmax.f32 %v781, %v782
        %v784 = vrot.slane %v586, 4
        %v785 = vmax.f32 %v586, %v784
        %v786 = vrot.slane %v785, 2
        %v787 = vmax.f32 %v785, %v786
        %v788 = vrot.slane %v787, 1
        %v789 = vmax.f32 %v787, %v788
        %v790 = vrot.slane %v591, 4
        %v791 = vmax.f32 %v591, %v790
        %v792 = vrot.slane %v791, 2
        %v793 = vmax.f32 %v791, %v792
        %v794 = vrot.slane %v793, 1
        %v795 = vmax.f32 %v793, %v794
        %v796 = vrot.slane %v596, 4
        %v797 = vmax.f32 %v596, %v796
        %v798 = vrot.slane %v797, 2
        %v799 = vmax.f32 %v797, %v798
        %v800 = vrot.slane %v799, 1
        %v801 = vmax.f32 %v799, %v800
        %v802 = vrot.slane %v601, 4
        %v803 = vmax.f32 %v601, %v802
        %v804 = vrot.slane %v803, 2
        %v805 = vmax.f32 %v803, %v804
        %v806 = vrot.slane %v805, 1
        %v807 = vmax.f32 %v805, %v806
        %v808 = vrot.slane %v606, 4
        %v809 = vmax.f32 %v606, %v808
        %v810 = vrot.slane %v809, 2
        %v811 = vmax.f32 %v809, %v810
        %v812 = vrot.slane %v811, 1
        %v813 = vmax.f32 %v811, %v812
        %v814 = vrot.slane %v611, 4
        %v815 = vmax.f32 %v611, %v814
        %v816 = vrot.slane %v815, 2
        %v817 = vmax.f32 %v815, %v816
        %v818 = vrot.slane %v817, 1
        %v819 = vmax.f32 %v817, %v818
        %v820 = vrot.slane %v616, 4
        %v821 = vmax.f32 %v616, %v820
        %v822 = vrot.slane %v821, 2
        %v823 = vmax.f32 %v821, %v822
        %v824 = vrot.slane %v823, 1
        %v825 = vmax.f32 %v823, %v824
        %v826 = vrot.slane %v621, 4
        %v827 = vmax.f32 %v621, %v826
        %v828 = vrot.slane %v827, 2
        %v829 = vmax.f32 %v827, %v828
        %v830 = vrot.slane %v829, 1
        %v831 = vmax.f32 %v829, %v830
        %v832 = vrot.slane %v626, 4
        %v833 = vmax.f32 %v626, %v832
        %v834 = vrot.slane %v833, 2
        %v835 = vmax.f32 %v833, %v834
        %v836 = vrot.slane %v835, 1
        %v837 = vmax.f32 %v835, %v836
        %v838 = vrot.slane %v631, 4
        %v839 = vmax.f32 %v631, %v838
        %v840 = vrot.slane %v839, 2
        %v841 = vmax.f32 %v839, %v840
        %v842 = vrot.slane %v841, 1
        %v843 = vmax.f32 %v841, %v842
        %v844 = vrot.slane %v636, 4
        %v845 = vmax.f32 %v636, %v844
        %v846 = vrot.slane %v845, 2
        %v847 = vmax.f32 %v845, %v846
        %v848 = vrot.slane %v847, 1
        %v849 = vmax.f32 %v847, %v848
        %v850 = vrot.slane %v641, 4
        %v851 = vmax.f32 %v641, %v850
        %v852 = vrot.slane %v851, 2
        %v853 = vmax.f32 %v851, %v852
        %v854 = vrot.slane %v853, 1
        %v855 = vmax.f32 %v853, %v854
        %v856 = vrot.slane %v646, 4
        %v857 = vmax.f32 %v646, %v856
        %v858 = vrot.slane %v857, 2
        %v859 = vmax.f32 %v857, %v858
        %v860 = vrot.slane %v859, 1
        %v861 = vmax.f32 %v859, %v860
        %v862 = vrot.slane %v651, 4
        %v863 = vmax.f32 %v651, %v862
        %v864 = vrot.slane %v863, 2
        %v865 = vmax.f32 %v863, %v864
        %v866 = vrot.slane %v865, 1
        %v867 = vmax.f32 %v865, %v866
        %v868 = vrot.slane %v656, 4
        %v869 = vmax.f32 %v656, %v868
        %v870 = vrot.slane %v869, 2
        %v871 = vmax.f32 %v869, %v870
        %v872 = vrot.slane %v871, 1
        %v873 = vmax.f32 %v871, %v872
        %v874 = vrot.slane %v661, 4
        %v875 = vmax.f32 %v661, %v874
        %v876 = vrot.slane %v875, 2
        %v877 = vmax.f32 %v875, %v876
        %v878 = vrot.slane %v877, 1
        %v879 = vmax.f32 %v877, %v878
        %v880 = vld [vmem:[%s2] sm:$0xff]
        %v881 = vld [vmem:[%s2 + $0x8] sm:$0xff]
        %v882 = vld [vmem:[%s2 + $0x10] sm:$0xff]
        %v883 = vld [vmem:[%s2 + $0x18] sm:$0xff]
        %v884 = vld [vmem:[%s2 + $0x20] sm:$0xf]
        %886 = vset.pattern.permute.xlu0 0
        %887 = vperm.xlu0 %886, %v880
        %v888 = vpop.permute.xlu0 %887
        %890 = vset.pattern.permute.xlu0 0
        %891 = vperm.xlu0 %890, %v881
        %v892 = vpop.permute.xlu0 %891
        %894 = vset.pattern.permute.xlu0 0
        %895 = vperm.xlu0 %894, %v882
        %v896 = vpop.permute.xlu0 %895
        %898 = vset.pattern.permute.xlu0 0
        %899 = vperm.xlu0 %898, %v883
        %v900 = vpop.permute.xlu0 %899
        %902 = vset.pattern.permute.xlu0 0
        %903 = vperm.xlu0 %902, %v884
        %v904 = vpop.permute.xlu0 %903
        %v905 = vrot.slane %v888, 1
        %v906 = vrot.slane %v888, 2
        %v907 = vrot.slane %v888, 3
        %v908 = vrot.slane %v888, 4
        %v909 = vrot.slane %v888, 5
        %v910 = vrot.slane %v888, 6
        %v911 = vrot.slane %v888, 7
        %v912 = vrot.slane %v892, 1
        %v913 = vrot.slane %v892, 2
        %v914 = vrot.slane %v892, 3
        %v915 = vrot.slane %v892, 4
        %v916 = vrot.slane %v892, 5
        %v917 = vrot.slane %v892, 6
        %v918 = vrot.slane %v892, 7
        %v919 = vrot.slane %v896, 1
        %v920 = vrot.slane %v896, 2
        %v921 = vrot.slane %v896, 3
        %v922 = vrot.slane %v896, 4
        %v923 = vrot.slane %v896, 5
        %v924 = vrot.slane %v896, 6
        %v925 = vrot.slane %v896, 7
        %v926 = vrot.slane %v900, 1
        %v927 = vrot.slane %v900, 2
        %v928 = vrot.slane %v900, 3
        %v929 = vrot.slane %v900, 4
        %v930 = vrot.slane %v900, 5
        %v931 = vrot.slane %v900, 6
        %v932 = vrot.slane %v900, 7
        %v933 = vrot.slane %v904, 1
        %v934 = vrot.slane %v904, 2
        %v935 = vrot.slane %v904, 3
        %v972 = vadd.f32 %v669, %v888
        %v973 = vadd.f32 %v675, %v905
        %v974 = vadd.f32 %v681, %v906
        %v975 = vadd.f32 %v687, %v907
        %v976 = vadd.f32 %v693, %v908
        %v977 = vadd.f32 %v699, %v909
        %v978 = vadd.f32 %v705, %v910
        %v979 = vadd.f32 %v711, %v911
        %v980 = vadd.f32 %v717, %v892
        %v981 = vadd.f32 %v723, %v912
        %v982 = vadd.f32 %v729, %v913
        %v983 = vadd.f32 %v735, %v914
        %v984 = vadd.f32 %v741, %v915
        %v985 = vadd.f32 %v747, %v916
        %v986 = vadd.f32 %v753, %v917
        %v987 = vadd.f32 %v759, %v918
        %v988 = vadd.f32 %v765, %v896
        %v989 = vadd.f32 %v771, %v919
        %v990 = vadd.f32 %v777, %v920
        %v991 = vadd.f32 %v783, %v921
        %v992 = vadd.f32 %v789, %v922
        %v993 = vadd.f32 %v795, %v923
        %v994 = vadd.f32 %v801, %v924
        %v995 = vadd.f32 %v807, %v925
        %v996 = vadd.f32 %v813, %v900
        %v997 = vadd.f32 %v819, %v926
        %v998 = vadd.f32 %v825, %v927
        %v999 = vadd.f32 %v831, %v928
        %v1000 = vadd.f32 %v837, %v929
        %v1001 = vadd.f32 %v843, %v930
        %v1002 = vadd.f32 %v849, %v931
        %v1003 = vadd.f32 %v855, %v932
        %v1004 = vadd.f32 %v861, %v904
        %v1005 = vadd.f32 %v867, %v933
        %v1006 = vadd.f32 %v873, %v934
        %v1007 = vadd.f32 %v879, %v935
        %v1008 = vtanh.pop %v972
        %v1009 = vtanh.pop %v973
        %v1010 = vtanh.pop %v974
        %v1011 = vtanh.pop %v975
        %v1012 = vtanh.pop %v976
        %v1013 = vtanh.pop %v977
        %v1014 = vtanh.pop %v978
        %v1015 = vtanh.pop %v979
        %v1016 = vtanh.pop %v980
        %v1017 = vtanh.pop %v981
        %v1018 = vtanh.pop %v982
        %v1019 = vtanh.pop %v983
        %v1020 = vtanh.pop %v984
        %v1021 = vtanh.pop %v985
        %v1022 = vtanh.pop %v986
        %v1023 = vtanh.pop %v987
        %v1024 = vtanh.pop %v988
        %v1025 = vtanh.pop %v989
        %v1026 = vtanh.pop %v990
        %v1027 = vtanh.pop %v991
        %v1028 = vtanh.pop %v992
        %v1029 = vtanh.pop %v993
        %v1030 = vtanh.pop %v994
        %v1031 = vtanh.pop %v995
        %v1032 = vtanh.pop %v996
        %v1033 = vtanh.pop %v997
        %v1034 = vtanh.pop %v998
        %v1035 = vtanh.pop %v999
        %v1036 = vtanh.pop %v1000
        %v1037 = vtanh.pop %v1001
        %v1038 = vtanh.pop %v1002
        %v1039 = vtanh.pop %v1003
        %v1040 = vtanh.pop %v1004
        %v1041 = vtanh.pop %v1005
        %v1042 = vtanh.pop %v1006
        %v1043 = vtanh.pop %v1007
        %v1080 = vrot.slane %v1009, 7
        %vm1081 = vcmask 1041409
        %v1082 = vsel %vm1081, %v1080, %v1008
        %v1083 = vrot.slane %v1010, 6
        %vm1084 = vcmask 1042434
        %v1085 = vsel %vm1084, %v1083, %v1082
        %v1086 = vrot.slane %v1011, 5
        %vm1087 = vcmask 1043459
        %v1088 = vsel %vm1087, %v1086, %v1085
        %v1089 = vrot.slane %v1012, 4
        %vm1090 = vcmask 1044484
        %v1091 = vsel %vm1090, %v1089, %v1088
        %v1092 = vrot.slane %v1013, 3
        %vm1093 = vcmask 1045509
        %v1094 = vsel %vm1093, %v1092, %v1091
        %v1095 = vrot.slane %v1014, 2
        %vm1096 = vcmask 1046534
        %v1097 = vsel %vm1096, %v1095, %v1094
        %v1098 = vrot.slane %v1015, 1
        %vm1099 = vcmask 1047559
        %v1100 = vsel %vm1099, %v1098, %v1097
        %v1101 = vrot.slane %v1017, 7
        %v1102 = vsel %vm1081, %v1101, %v1016
        %v1103 = vrot.slane %v1018, 6
        %v1104 = vsel %vm1084, %v1103, %v1102
        %v1105 = vrot.slane %v1019, 5
        %v1106 = vsel %vm1087, %v1105, %v1104
        %v1107 = vrot.slane %v1020, 4
        %v1108 = vsel %vm1090, %v1107, %v1106
        %v1109 = vrot.slane %v1021, 3
        %v1110 = vsel %vm1093, %v1109, %v1108
        %v1111 = vrot.slane %v1022, 2
        %v1112 = vsel %vm1096, %v1111, %v1110
        %v1113 = vrot.slane %v1023, 1
        %v1114 = vsel %vm1099, %v1113, %v1112
        %v1115 = vrot.slane %v1025, 7
        %v1116 = vsel %vm1081, %v1115, %v1024
        %v1117 = vrot.slane %v1026, 6
        %v1118 = vsel %vm1084, %v1117, %v1116
        %v1119 = vrot.slane %v1027, 5
        %v1120 = vsel %vm1087, %v1119, %v1118
        %v1121 = vrot.slane %v1028, 4
        %v1122 = vsel %vm1090, %v1121, %v1120
        %v1123 = vrot.slane %v1029, 3
        %v1124 = vsel %vm1093, %v1123, %v1122
        %v1125 = vrot.slane %v1030, 2
        %v1126 = vsel %vm1096, %v1125, %v1124
        %v1127 = vrot.slane %v1031, 1
        %v1128 = vsel %vm1099, %v1127, %v1126
        %v1129 = vrot.slane %v1033, 7
        %v1130 = vsel %vm1081, %v1129, %v1032
        %v1131 = vrot.slane %v1034, 6
        %v1132 = vsel %vm1084, %v1131, %v1130
        %v1133 = vrot.slane %v1035, 5
        %v1134 = vsel %vm1087, %v1133, %v1132
        %v1135 = vrot.slane %v1036, 4
        %v1136 = vsel %vm1090, %v1135, %v1134
        %v1137 = vrot.slane %v1037, 3
        %v1138 = vsel %vm1093, %v1137, %v1136
        %v1139 = vrot.slane %v1038, 2
        %v1140 = vsel %vm1096, %v1139, %v1138
        %v1141 = vrot.slane %v1039, 1
        %v1142 = vsel %vm1099, %v1141, %v1140
        %v1143 = vrot.slane %v1041, 7
        %v1144 = vsel %vm1081, %v1143, %v1040
        %v1145 = vrot.slane %v1042, 6
        %v1146 = vsel %vm1084, %v1145, %v1144
        %v1147 = vrot.slane %v1043, 5
        %v1148 = vsel %vm1087, %v1147, %v1146
        %1154 = vxpose.xlu0.b32.start [1/16] %v1100, 128
        %1155 = vxpose.xlu0.b32.cont [2/16] %v1114, 128
        %1156 = vxpose.xlu0.b32.cont [3/16] %v1128, 128
        %1157 = vxpose.xlu0.b32.cont [4/16] %v1142, 128
        %1158 = vxpose.xlu0.b32.cont [5/16] %v1148, 128
        %1159 = vxpose.xlu0.b32.cont [6/16] 0.0, 128
        %1160 = vxpose.xlu0.b32.cont [7/16] 0.0, 128
        %1161 = vxpose.xlu0.b32.cont [8/16] 0.0, 128
        %1162 = vxpose.xlu0.b32.cont [9/16] 0.0, 128
        %1163 = vxpose.xlu0.b32.cont [10/16] 0.0, 128
        %1164 = vxpose.xlu0.b32.cont [11/16] 0.0, 128
        %1165 = vxpose.xlu0.b32.cont [12/16] 0.0, 128
        %1166 = vxpose.xlu0.b32.cont [13/16] 0.0, 128
        %1167 = vxpose.xlu0.b32.cont [14/16] 0.0, 128
        %1168 = vxpose.xlu0.b32.cont [15/16] 0.0, 128
        %1169 = vxpose.xlu0.b32.end [16/16] 0.0, 128
        %v1170 = vpop.trf.xlu0
        %v1171 = vpop.trf.xlu0
        %v1172 = vpop.trf.xlu0
        %v1173 = vpop.trf.xlu0
        %v1174 = vpop.trf.xlu0
        %v1175 = vpop.trf.xlu0
        %v1176 = vpop.trf.xlu0
        %v1177 = vpop.trf.xlu0
        %v1178 = vpop.trf.xlu0
        %v1179 = vpop.trf.xlu0
        %v1180 = vpop.trf.xlu0
        %v1181 = vpop.trf.xlu0
        %v1182 = vpop.trf.xlu0
        %v1183 = vpop.trf.xlu0
        %v1184 = vpop.trf.xlu0
        %v1185 = vpop.trf.xlu0
        %vm1186 = vcmask 293888
        %1187 = vst.msk [vmem:[%s166] sm:$0xff] %vm1186, %v1170
        %1188 = vst.msk [vmem:[%s166 + $0x8] sm:$0xff] %vm1186, %v1171
        %1189 = vst.msk [vmem:[%s166 + $0x10] sm:$0xff] %vm1186, %v1172
        %1190 = vst.msk [vmem:[%s166 + $0x18] sm:$0xff] %vm1186, %v1173
        %1191 = vst.msk [vmem:[%s166 + $0x20] sm:$0xff] %vm1186, %v1174
        %1192 = vst.msk [vmem:[%s166 + $0x28] sm:$0xff] %vm1186, %v1175
        %1193 = vst.msk [vmem:[%s166 + $0x30] sm:$0xff] %vm1186, %v1176
        %1194 = vst.msk [vmem:[%s166 + $0x38] sm:$0xff] %vm1186, %v1177
        %1195 = vst.msk [vmem:[%s166 + $0x40] sm:$0xff] %vm1186, %v1178
        %1196 = vst.msk [vmem:[%s166 + $0x48] sm:$0xff] %vm1186, %v1179
        %1197 = vst.msk [vmem:[%s166 + $0x50] sm:$0xff] %vm1186, %v1180
        %1198 = vst.msk [vmem:[%s166 + $0x58] sm:$0xff] %vm1186, %v1181
        %1199 = vst.msk [vmem:[%s166 + $0x60] sm:$0xff] %vm1186, %v1182
        %1200 = vst.msk [vmem:[%s166 + $0x68] sm:$0xff] %vm1186, %v1183
        %1201 = vst.msk [vmem:[%s166 + $0x70] sm:$0xff] %vm1186, %v1184
        %1202 = vst.msk [vmem:[%s166 + $0x78] sm:$0xff] %vm1186, %v1185
        %s1203 = sand.u32 %s93, 1
        %s1204 = scalar_lea.sflag [#allocation3], %s1203
        %s1205 = sand.u32 %s93, 1
        %s1206 = smul.addr %s1205, 128
        %s1207 = scalar_lea.vmem [#allocation2], %s1206
        // Predicated region
        $region33: #{tpu_custom_call.1} parent=31 // pred_check
          %p1208 = pneg %p103
        $region34: #{tpu_custom_call.1} parent=31 // pred_check_branch
          %1210 = sbr.rel (%p1208) target = $region36
        $region35: #{tpu_custom_call.1} parent=31 // pred_region
          %s1211 = smul.u32 8, %s17
          %s1213 = ssub.s32 2048, 2048
          %1214 = vsyncadd %s1204, %s1213
          %s1215 = smul.addr %s1211, 2
          %s1216 = smul.addr %s1215, 128
          %s1217 = scalar_lea.hbm %s3, %s1216
          %s1218 = sshll.u32 %s1207, 4
          %s1219 = int_to_ptr.vmem [resolvable:$true] %s1218
          %1224 = dma.vmem_to_hbm [thread:$0]  %s1219, 2048, %s1217, %s1204, 128, 128, 8
        $region36: #{tpu_custom_call.1} parent=31 // pred_fallthru
          _
      $region32: #{tpu_custom_call.1} parent=5 // pred_fallthru
        _
      %p1225 = scmp.le.s32.totalorder 2, %s12
      // Predicated region
      $region37: #{tpu_custom_call.1} parent=5 // pred_check
        %p1226 = pneg %p1225
      $region38: #{tpu_custom_call.1} parent=5 // pred_check_branch
        %1228 = sbr.rel (%p1226) target = $region40
      $region39: #{tpu_custom_call.1} parent=5 // pred_region
        %s1229 = ssub.s32 %s12, 2
        // Predicated region
        $region41: #{tpu_custom_call.1} parent=39 // pred_check
          %p1230 = pneg %p109
        $region42: #{tpu_custom_call.1} parent=39 // pred_check_branch
          %1232 = sbr.rel (%p1230) target = $region44
        $region43: #{tpu_custom_call.1} parent=39 // pred_region
          %s1233 = sand.u32 %s94, 1
          %s1234 = scalar_lea.sflag [#allocation3], %s1233
          %s1235 = sand.u32 %s94, 1
          %s1236 = smul.addr %s1235, 128
          %s1237 = scalar_lea.vmem [#allocation2], %s1236
          %1238 = dma.done %s1234, 2048
        $region44: #{tpu_custom_call.1} parent=39 // pred_fallthru
          _
      $region40: #{tpu_custom_call.1} parent=5 // pred_fallthru
        _
    $region6: #{tpu_custom_call.1} parent=1 // loop_footer
      %s16 = sadd.s32 1, %s12
    $region7: #{tpu_custom_call.1} parent=1 // loop_footer_branch
      %11 = sbr.rel target = $region3
    $region8: #{tpu_custom_call.1} parent=1 // loop_exit
      _
    %1239 = vsyncpa [#allocation3], 1
    %s1240 = scalar_lea.sflag [#allocation3], 1
    %1241 = vsyncpa %s1240, 1

</llo_original>
